<compile_context>
chip_gen: v6e
topology: v6e:2x2x1
jax: 0.10.0
libtpu: 0.0.40
codegen_flags: <defaults>
</compile_context>

<pallas_src>
import jax
import jax.numpy as jnp
from jax import lax
from jax.experimental import pallas as pl
from jax.experimental.pallas import tpu as pltpu

_LANE = 128
_SUBLANE = 8

_VMEM_TILE_BUDGET = 20 * 1024 * 1024   # per-step working-set budget (safe on v5e/v6e/v7x)
_VMEM_LIMIT_CAP = 48 * 1024 * 1024     # stays under v7x's 64 MiB/TC physical VMEM


def _round_up(x, m):
    return (x + m - 1) // m * m


def _cdiv(a, b):
    return (a + b - 1) // b


def _make_kernel(input_dims, fc1, fc2, compute_dtype):
    def kernel(x_ref, w_ref, a_ref, out_ref):
        # x_ref : [tm, input_dims] f32   -- streamed state tile, natural layout
        # w_ref : [Rw, Cw] compute_dtype -- packed W1 | W2, VMEM-resident (constant map)
        # a_ref : [Ra, 128] f32          -- packed b1 | b2 | w3 | b3 columns, resident
        x = x_ref[...].astype(compute_dtype)                    # [tm, in]

        w1 = w_ref[:fc1, :input_dims]                           # [fc1, in]
        w2 = w_ref[:fc2, input_dims:input_dims + fc1]           # [fc2, fc1]
        b1 = a_ref[:fc1, 0:1]                                   # [fc1, 1] f32
        b2 = a_ref[:fc2, 1:2]                                   # [fc2, 1]
        w3 = a_ref[:fc2, 2:3]                                   # [fc2, 1]
        b3 = a_ref[0:1, 3:4]                                    # [1, 1]

        # fc1 + ReLU: contract input_dims of both operands -> batch lands on lanes.
        # (The implied [tm,in]->[in,tm] relayout rides the idle XLU; f32 accumulate.)
        h1 = lax.dot_general(w1, x, (((1,), (1,)), ((), ())),
                             preferred_element_type=jnp.float32)  # [fc1, tm]
        h1 = jnp.maximum(h1 + b1, 0.0)

        # fc2 + ReLU : [fc2, tm]
        h2 = jnp.dot(w2, h1.astype(compute_dtype),
                     preferred_element_type=jnp.float32)
        h2 = jnp.maximum(h2 + b2, 0.0)

        # fc3 (out_features = 1): VPU multiply + cross-sublane reduce, MXU stays free.
        v = jnp.sum(h2 * w3, axis=0, keepdims=True) + b3          # [1, tm]
        out_ref[...] = v.astype(out_ref.dtype)

    return kernel


def pack_params(params, input_dims, fc1, fc2, compute_dtype=jnp.float32):
    """Pack torch-layout (w1,b1,w2,b2,w3,b3) into two small VMEM-resident buffers.

    wbuf [R, Cw] compute_dtype : W1 in [:fc1, :in], W2 in [:fc2, in:in+fc1]
                                 (cast to the MXU compute dtype exactly once, here)
    abuf [R, 128] f32          : col0=b1, col1=b2, col2=w3, [0,3]=b3
    """
    w1, b1, w2, b2, w3, b3 = params
    assert w1.shape == (fc1, input_dims), w1.shape
    assert w2.shape == (fc2, fc1), w2.shape
    assert w3.shape == (1, fc2), w3.shape
    assert b1.shape == (fc1,) and b2.shape == (fc2,) and b3.shape == (1,)

    rows = _round_up(max(fc1, fc2, _SUBLANE), _SUBLANE)
    wcols = _round_up(input_dims + fc1, _LANE)

    wbuf = jnp.zeros((rows, wcols), compute_dtype)
    wbuf = wbuf.at[:fc1, :input_dims].set(w1.astype(compute_dtype))
    wbuf = wbuf.at[:fc2, input_dims:input_dims + fc1].set(w2.astype(compute_dtype))

    abuf = jnp.zeros((rows, _LANE), jnp.float32)
    abuf = abuf.at[:fc1, 0].set(b1.astype(jnp.float32))
    abuf = abuf.at[:fc2, 1].set(b2.astype(jnp.float32))
    abuf = abuf.at[:fc2, 2].set(w3[0].astype(jnp.float32))
    abuf = abuf.at[0, 3].set(b3[0].astype(jnp.float32))
    return wbuf, abuf


def _bytes_per_batch_row(input_dims, fc1, fc2, compute_dtype):
    """Approximate per-batch-row VMEM cost of one grid step (for tile sizing)."""
    cb = jnp.dtype(compute_dtype).itemsize
    in_lanes = _round_up(input_dims, _LANE)        # streamed block is lane-padded in VMEM
    return (2 * in_lanes * 4                       # double-buffered input tile (f32)
            + 2 * 4                                # double-buffered [1, tm] output tile
            + input_dims * cb                      # relayouted x in compute dtype
            + fc1 * cb                             # h1 cast fed to fc2
            + (fc1 + fc2) * 4)                     # h1 / h2 f32 accumulators


def critic_forward(state, params, *, block_batch=32768, compute_dtype=jnp.float32,
                   packed=None):
    """state: [B, input_dims] -> value [B, 1] f32 (matches torch CriticNetwork.forward)."""
    B, input_dims = state.shape
    fc1 = params[0].shape[0]
    fc2 = params[2].shape[0]
    if packed is None:   # pack once per parameter set in real use; cheap either way
        packed = pack_params(params, input_dims, fc1, fc2, compute_dtype)
    wbuf, abuf = packed

    x = state.astype(jnp.float32)
    # Tiny batches: pad up to a single 128-lane tile (negligible).  Larger batches stream
    # unpadded in natural layout; the final partial tile is a clipped edge block.
    if B < _LANE:
        x = jnp.pad(x, ((0, _LANE - B), (0, 0)))
    Bp = x.shape[0]

    # --- Tile selection: as large as the VMEM budget allows, balanced over >=2 grid
    # steps when possible so both v7x TensorCores get work. ---
    bpr = _bytes_per_batch_row(input_dims, fc1, fc2, compute_dtype)
    tm_cap = max(_LANE, (_VMEM_TILE_BUDGET // bpr) // _LANE * _LANE)
    tm = min(_round_up(block_batch, _LANE), tm_cap, _round_up(Bp, _LANE))
    n_tiles = _cdiv(Bp, tm)
    if n_tiles == 1 and Bp > _LANE:
        n_tiles = 2
    tm = max(_LANE, _round_up(_cdiv(Bp, n_tiles), _LANE))   # balanced, multiple of 128
    grid = _cdiv(Bp, tm)

    vmem_limit = int(min(max(2 * tm * bpr, 16 * 1024 * 1024), _VMEM_LIMIT_CAP))

    kernel = _make_kernel(input_dims, fc1, fc2, compute_dtype)
    out = pl.pallas_call(
        kernel,
        out_shape=jax.ShapeDtypeStruct((1, Bp), jnp.float32),
        grid_spec=pltpu.PrefetchScalarGridSpec(
            num_scalar_prefetch=0,
            grid=(grid,),
            in_specs=[
                pl.BlockSpec((tm, input_dims), lambda i: (i, 0)),  # streamed state tiles
                pl.BlockSpec(wbuf.shape, lambda i: (0, 0)),        # weights: VMEM-resident
                pl.BlockSpec(abuf.shape, lambda i: (0, 0)),        # biases : VMEM-resident
            ],
            out_specs=pl.BlockSpec((1, tm), lambda i: (0, i)),     # lane-dense output slab
        ),
        compiler_params=pltpu.CompilerParams(
            dimension_semantics=("parallel",),
            vmem_limit_bytes=vmem_limit),
    )(x, wbuf, abuf)

    return out[:, :B].T                                            # [B, 1]


def init_params(key, input_dims, fc1_dims=32, fc2_dims=32):
    """nn.Linear-style init: W ~ U(-1/sqrt(fan_in), +1/sqrt(fan_in)), W is [out, in]."""
    ks = jax.random.split(key, 6)

    def linear(kw, kb, fan_in, fan_out):
        bound = 1.0 / jnp.sqrt(jnp.float32(fan_in))
        w = jax.random.uniform(kw, (fan_out, fan_in), jnp.float32, -bound, bound)
        b = jax.random.uniform(kb, (fan_out,), jnp.float32, -bound, bound)
        return w, b

    w1, b1 = linear(ks[0], ks[1], input_dims, fc1_dims)
    w2, b2 = linear(ks[2], ks[3], fc1_dims, fc2_dims)
    w3, b3 = linear(ks[4], ks[5], fc2_dims, 1)
    return (w1, b1, w2, b2, w3, b3)


def critic_reference(state, params):
    """Plain-JAX reference of the same forward pass (torch layout: y = x @ W.T + b)."""
    w1, b1, w2, b2, w3, b3 = params
    h1 = jnp.maximum(state @ w1.T + b1, 0.0)
    h2 = jnp.maximum(h1 @ w2.T + b2, 0.0)
    return h2 @ w3.T + b3


# TODO(synk): Adam optimizer and save_checkpoint/load_checkpoint (training state + file
# I/O) are outside the forward pass and not translated to Pallas.

if __name__ == "__main__":
    key = jax.random.PRNGKey(0)
    k_param, k_small, k_large = jax.random.split(key, 3)

    input_dims = 16          # *input_dims in the torch module; small observation size
    fc1_dims, fc2_dims = 32, 32
    params = init_params(k_param, input_dims, fc1_dims, fc2_dims)

    # Small batch (single padded tile), exact f32 path.
    state_small = jax.random.normal(k_small, (8, input_dims), jnp.float32)
    v_small = critic_forward(state_small, params)
    jax.block_until_ready(v_small)
    ref_small = critic_reference(state_small, params)
    assert v_small.shape == (8, 1)
    assert jnp.allclose(v_small, ref_small, atol=1e-4, rtol=1e-4), "f32 small-batch mismatch"

    # Larger, non-128-multiple batch: exercises multi-step parallel grid, balanced tiles
    # and the clipped final tile (no wrapper-side padding/copy).
    state_large = jax.random.normal(k_large, (1300, input_dims), jnp.float32)
    v_large = critic_forward(state_large, params)
    jax.block_until_ready(v_large)
    ref_large = critic_reference(state_large, params)
    assert v_large.shape == (1300, 1)
    assert jnp.allclose(v_large, ref_large, atol=1e-4, rtol=1e-4), "f32 large-batch mismatch"

    # Optional bf16 MXU-operand path (recommended default on v6e/v7x); f32 accumulation,
    # loosened tolerance since operand rounding changes numerics vs the f32 torch module.
    v_bf16 = critic_forward(state_small, params, compute_dtype=jnp.bfloat16)
    jax.block_until_ready(v_bf16)
    assert jnp.allclose(v_bf16, ref_small, atol=2e-1, rtol=5e-2), "bf16 path mismatch"

    print("KERNEL_OK")
</pallas_src>

<mosaic_0001>
module attributes {stable_mosaic.version = 11 : i64} {
  func.func @kernel(%arg0: i32, %arg1: memref<128x16xf32, #tpu.memory_space<vmem>>, %arg2: memref<32x128xf32, #tpu.memory_space<vmem>>, %arg3: memref<32x128xf32, #tpu.memory_space<vmem>>, %arg4: memref<1x128xf32, #tpu.memory_space<vmem>>) attributes {dimension_semantics = [#tpu.dimension_semantics<parallel>], iteration_bounds = array<i64: 1>, scalar_prefetch = 0 : i64, scratch_operands = 0 : i64, tpu.core_type = #tpu.core_type<tc>, window_params = [{transform_indices = @transform_0, window_bounds = array<i64: 128, 16>}, {pipeline_mode = #tpu.pipeline_mode<synchronous>, transform_indices = @transform_1, window_bounds = array<i64: 32, 128>}, {pipeline_mode = #tpu.pipeline_mode<synchronous>, transform_indices = @transform_2, window_bounds = array<i64: 32, 128>}, {transform_indices = @transform_3, window_bounds = array<i64: 1, 128>}]} {
    %c0 = arith.constant 0 : index
    %c0_0 = arith.constant 0 : index
    %0 = vector.load %arg1[%c0, %c0_0] : memref<128x16xf32, #tpu.memory_space<vmem>>, vector<128x16xf32>
    %c0_1 = arith.constant 0 : index
    %c0_2 = arith.constant 0 : index
    %1 = vector.load %arg2[%c0_1, %c0_2] : memref<32x128xf32, #tpu.memory_space<vmem>>, vector<32x16xf32>
    %c0_3 = arith.constant 0 : index
    %c16 = arith.constant 16 : index
    %2 = vector.load %arg2[%c0_3, %c16] : memref<32x128xf32, #tpu.memory_space<vmem>>, vector<32x32xf32>
    %c0_4 = arith.constant 0 : index
    %c0_5 = arith.constant 0 : index
    %3 = vector.load %arg3[%c0_4, %c0_5] : memref<32x128xf32, #tpu.memory_space<vmem>>, vector<32x1xf32>
    %c0_6 = arith.constant 0 : index
    %c1 = arith.constant 1 : index
    %4 = vector.load %arg3[%c0_6, %c1] : memref<32x128xf32, #tpu.memory_space<vmem>>, vector<32x1xf32>
    %c0_7 = arith.constant 0 : index
    %c2 = arith.constant 2 : index
    %5 = vector.load %arg3[%c0_7, %c2] : memref<32x128xf32, #tpu.memory_space<vmem>>, vector<32x1xf32>
    %c0_8 = arith.constant 0 : index
    %c3 = arith.constant 3 : index
    %6 = vector.load %arg3[%c0_8, %c3] : memref<32x128xf32, #tpu.memory_space<vmem>>, vector<1x1xf32>
    %cst = arith.constant dense<0.000000e+00> : vector<32x128xf32>
    %7 = tpu.matmul %1, %0, %cst {dimension_numbers = #tpu.dot_dimension_numbers<[1], [1], [0], [0], [0, 0, 1, 0], [], []>} : vector<32x16xf32>, vector<128x16xf32>, vector<32x128xf32> -> vector<32x128xf32>
    %8 = vector.broadcast %3 : vector<32x1xf32> to vector<32x128xf32>
    %9 = arith.addf %7, %8 : vector<32x128xf32>
    %cst_9 = arith.constant 0.000000e+00 : f32
    %10 = vector.broadcast %cst_9 : f32 to vector<32x128xf32>
    %11 = arith.maximumf %9, %10 : vector<32x128xf32>
    %cst_10 = arith.constant dense<0.000000e+00> : vector<32x128xf32>
    %12 = tpu.matmul %2, %11, %cst_10 {dimension_numbers = #tpu.dot_dimension_numbers<[1], [0], [0], [1], [0, 0, 1, 1], [], []>} : vector<32x32xf32>, vector<32x128xf32>, vector<32x128xf32> -> vector<32x128xf32>
    %13 = vector.broadcast %4 : vector<32x1xf32> to vector<32x128xf32>
    %14 = arith.addf %12, %13 : vector<32x128xf32>
    %cst_11 = arith.constant 0.000000e+00 : f32
    %15 = vector.broadcast %cst_11 : f32 to vector<32x128xf32>
    %16 = arith.maximumf %14, %15 : vector<32x128xf32>
    %17 = vector.broadcast %5 : vector<32x1xf32> to vector<32x128xf32>
    %18 = arith.mulf %16, %17 : vector<32x128xf32>
    %cst_12 = arith.constant dense<0.000000e+00> : vector<128xf32>
    %19 = vector.multi_reduction <add>, %18, %cst_12 [0] : vector<32x128xf32> to vector<128xf32>
    %20 = vector.shape_cast %19 : vector<128xf32> to vector<1x128xf32>
    %21 = vector.broadcast %6 : vector<1x1xf32> to vector<1x128xf32>
    %22 = arith.addf %20, %21 : vector<1x128xf32>
    %c0_13 = arith.constant 0 : index
    %c0_14 = arith.constant 0 : index
    %23 = vector.load %arg4[%c0_13, %c0_14] : memref<1x128xf32, #tpu.memory_space<vmem>>, vector<1x128xf32>
    tpu.vector_store %arg4[%c0_13, %c0_14], %22 {strides = array<i32>} : memref<1x128xf32, #tpu.memory_space<vmem>>, vector<1x128xf32>,
    return
  }
  func.func @transform_0(%arg0: i32) -> (i32, i32) {
    %c0_i32 = arith.constant 0 : i32
    %c0_i32_0 = arith.constant 0 : i32
    return %arg0, %c0_i32 : i32, i32
  }
  func.func @transform_1(%arg0: i32) -> (i32, i32) {
    %c0_i32 = arith.constant 0 : i32
    %c0_i32_0 = arith.constant 0 : i32
    %c0_i32_1 = arith.constant 0 : i32
    return %c0_i32, %c0_i32_0 : i32, i32
  }
  func.func @transform_2(%arg0: i32) -> (i32, i32) {
    %c0_i32 = arith.constant 0 : i32
    %c0_i32_0 = arith.constant 0 : i32
    %c0_i32_1 = arith.constant 0 : i32
    return %c0_i32, %c0_i32_0 : i32, i32
  }
  func.func @transform_3(%arg0: i32) -> (i32, i32) {
    %c0_i32 = arith.constant 0 : i32
    %c0_i32_0 = arith.constant 0 : i32
    return %c0_i32, %arg0 : i32, i32
  }
}

</mosaic_0001>

<llo_original>
// kernel: tpu_custom_call.1
$region0: #{tpu_custom_call.1}
  #allocation0 [shape = 'u32[]', space=smem, size = 0x4, offset = 0x4, fixed_abs, tag = 'smem constant byte address 0x4 - core index']
  #allocation1 [shape = 'u32[144,128]{1,0:T(1,128)}', space=vmem, size = 0x12000, scoped, tag = 'internal scratch']
  %s0 = inlined_call_operand.vmem [shape: f32[128,16], index: 0, kind: input, shape index: {}]
  %s1 = inlined_call_operand.vmem [shape: f32[32,128], index: 1, kind: input, shape index: {}]
  %s2 = inlined_call_operand.vmem [shape: f32[32,128], index: 2, kind: input, shape index: {}]
  %s3 = inlined_call_operand.hbm [shape: f32[1,128], index: 3, kind: output, shape index: {}]
  %s4 = sld [smem:[#allocation0]]
  $region22: #{tpu_custom_call.1} parent=0
    _
  %s6 = ssub.s32 1, %s4
  %s7 = scalar_select 0, %s6, %s4
  $region1: #{tpu_custom_call.1} parent=0
    #allocation2 [shape = 'u8[512]{0}', space=vmem, size = 0x400, scoped, tag = 'output window, operand 0, single buffered']
    #allocation3 [shape = 's32[1]{0}', space=sflag, size = 0x4, scoped, tag = 'scoped memory for tpu_custom_call.1']
    %8 = vsyncpa [#allocation3], 0
    // Predicated region
    $region2: #{tpu_custom_call.1} parent=1 // pred_check
      _
    $region3: #{tpu_custom_call.1} parent=1 // pred_check_branch
      %10 = sbr.rel (0) target = $region5
    $region4: #{tpu_custom_call.1} parent=1 // pred_region
      _
    $region5: #{tpu_custom_call.1} parent=1 // pred_fallthru
      _
    // Predicated region
    $region6: #{tpu_custom_call.1} parent=1 // pred_check
      _
    $region7: #{tpu_custom_call.1} parent=1 // pred_check_branch
      %12 = sbr.rel (0) target = $region9
    $region8: #{tpu_custom_call.1} parent=1 // pred_region
      _
    $region9: #{tpu_custom_call.1} parent=1 // pred_fallthru
      _
    // Predicated region
    $region10: #{tpu_custom_call.1} parent=1 // pred_check
      _
    $region11: #{tpu_custom_call.1} parent=1 // pred_check_branch
      %14 = sbr.rel (0) target = $region13
    $region12: #{tpu_custom_call.1} parent=1 // pred_region
      _
    $region13: #{tpu_custom_call.1} parent=1 // pred_fallthru
      _
    %v15 = vld [vmem:[%s0] sm:$0xff]
    %v16 = vld [vmem:[%s0 + $0x8] sm:$0xff]
    %v17 = vld [vmem:[%s0 + $0x10] sm:$0xff]
    %v18 = vld [vmem:[%s0 + $0x18] sm:$0xff]
    %v19 = vld [vmem:[%s0 + $0x20] sm:$0xff]
    %v20 = vld [vmem:[%s0 + $0x28] sm:$0xff]
    %v21 = vld [vmem:[%s0 + $0x30] sm:$0xff]
    %v22 = vld [vmem:[%s0 + $0x38] sm:$0xff]
    %v23 = vld [vmem:[%s0 + $0x40] sm:$0xff]
    %v24 = vld [vmem:[%s0 + $0x48] sm:$0xff]
    %v25 = vld [vmem:[%s0 + $0x50] sm:$0xff]
    %v26 = vld [vmem:[%s0 + $0x58] sm:$0xff]
    %v27 = vld [vmem:[%s0 + $0x60] sm:$0xff]
    %v28 = vld [vmem:[%s0 + $0x68] sm:$0xff]
    %v29 = vld [vmem:[%s0 + $0x70] sm:$0xff]
    %v30 = vld [vmem:[%s0 + $0x78] sm:$0xff]
    %v31 = vld [vmem:[%s1] sm:$0xff]
    %v32 = vld [vmem:[%s1 + $0x8] sm:$0xff]
    %v33 = vld [vmem:[%s1 + $0x10] sm:$0xff]
    %v34 = vld [vmem:[%s1 + $0x18] sm:$0xff]
    %v35 = vld [vmem:[%s2] sm:$0xff]
    %v36 = vld [vmem:[%s2 + $0x8] sm:$0xff]
    %v37 = vld [vmem:[%s2 + $0x10] sm:$0xff]
    %v38 = vld [vmem:[%s2 + $0x18] sm:$0xff]
    %v39 = vld [vmem:[%s2] sm:$0x1]
    %41 = vset.pattern.permute.xlu0 0
    %42 = vperm.xlu0 %41, %v35
    %v43 = vpop.permute.xlu0 %42
    %46 = vset.pattern.permute.xlu0 0
    %47 = vperm.xlu0 %46, %v36
    %v48 = vpop.permute.xlu0 %47
    %51 = vset.pattern.permute.xlu0 0
    %52 = vperm.xlu0 %51, %v37
    %v53 = vpop.permute.xlu0 %52
    %56 = vset.pattern.permute.xlu0 0
    %57 = vperm.xlu0 %56, %v38
    %v58 = vpop.permute.xlu0 %57
    %vm60 = vcmask 130048
    %v62 = vsel %vm60, %v31, 0
    %v65 = vsel %vm60, %v32, 0
    %v68 = vsel %vm60, %v33, 0
    %v71 = vsel %vm60, %v34, 0
    %v74 = vsel %vm60, %v15, 0
    %v77 = vsel %vm60, %v16, 0
    %v80 = vsel %vm60, %v17, 0
    %v83 = vsel %vm60, %v18, 0
    %v86 = vsel %vm60, %v19, 0
    %v89 = vsel %vm60, %v20, 0
    %v92 = vsel %vm60, %v21, 0
    %v95 = vsel %vm60, %v22, 0
    %v98 = vsel %vm60, %v23, 0
    %v101 = vsel %vm60, %v24, 0
    %v104 = vsel %vm60, %v25, 0
    %v107 = vsel %vm60, %v26, 0
    %v110 = vsel %vm60, %v27, 0
    %v113 = vsel %vm60, %v28, 0
    %v116 = vsel %vm60, %v29, 0
    %v119 = vsel %vm60, %v30, 0
    %121 = vmatprep.subr.mxu0 0.0
    %122 = vmatpush1.xpose.msra.mxu0 %v119
    %123 = vmatprep.subr.mxu0 0.0
    %124 = vmatpush1.xpose.msra.mxu0 %v116
    %125 = vmatprep.subr.mxu0 0.0
    %126 = vmatpush1.xpose.msra.mxu0 %v113
    %127 = vmatprep.subr.mxu0 0.0
    %128 = vmatpush1.xpose.msra.mxu0 %v110
    %129 = vmatprep.subr.mxu0 0.0
    %130 = vmatpush1.xpose.msra.mxu0 %v107
    %131 = vmatprep.subr.mxu0 0.0
    %132 = vmatpush1.xpose.msra.mxu0 %v104
    %133 = vmatprep.subr.mxu0 0.0
    %134 = vmatpush1.xpose.msra.mxu0 %v101
    %135 = vmatprep.subr.mxu0 0.0
    %136 = vmatpush1.xpose.msra.mxu0 %v98
    %137 = vmatprep.subr.mxu0 0.0
    %138 = vmatpush1.xpose.msra.mxu0 %v95
    %139 = vmatprep.subr.mxu0 0.0
    %140 = vmatpush1.xpose.msra.mxu0 %v92
    %141 = vmatprep.subr.mxu0 0.0
    %142 = vmatpush1.xpose.msra.mxu0 %v89
    %143 = vmatprep.subr.mxu0 0.0
    %144 = vmatpush1.xpose.msra.mxu0 %v86
    %145 = vmatprep.subr.mxu0 0.0
    %146 = vmatpush1.xpose.msra.mxu0 %v83
    %147 = vmatprep.subr.mxu0 0.0
    %148 = vmatpush1.xpose.msra.mxu0 %v80
    %149 = vmatprep.subr.mxu0 0.0
    %150 = vmatpush1.xpose.msra.mxu0 %v77
    %151 = vmatprep.subr.mxu0 0.0
    %152 = vmatpush1.xpose.msra.mxu0 %v74
    %153 = vmatprep.subr.mxu0 0.0
    %154 = vmatpush2.xpose.msra.mxu0 0.0
    %155 = vmatprep.subr.mxu0 0.0
    %156 = vmatpush2.xpose.msra.mxu0 0.0
    %157 = vmatprep.subr.mxu0 0.0
    %158 = vmatpush2.xpose.msra.mxu0 0.0
    %159 = vmatprep.subr.mxu0 0.0
    %160 = vmatpush2.xpose.msra.mxu0 0.0
    %161 = vmatprep.subr.mxu0 0.0
    %162 = vmatpush2.xpose.msra.mxu0 0.0
    %163 = vmatprep.subr.mxu0 0.0
    %164 = vmatpush2.xpose.msra.mxu0 0.0
    %165 = vmatprep.subr.mxu0 0.0
    %166 = vmatpush2.xpose.msra.mxu0 0.0
    %167 = vmatprep.subr.mxu0 0.0
    %168 = vmatpush2.xpose.msra.mxu0 0.0
    %169 = vmatprep.subr.mxu0 0.0
    %170 = vmatpush2.xpose.msra.mxu0 0.0
    %171 = vmatprep.subr.mxu0 0.0
    %172 = vmatpush2.xpose.msra.mxu0 0.0
    %173 = vmatprep.subr.mxu0 0.0
    %174 = vmatpush2.xpose.msra.mxu0 0.0
    %175 = vmatprep.subr.mxu0 0.0
    %176 = vmatpush2.xpose.msra.mxu0 0.0
    %177 = vmatprep.subr.mxu0 0.0
    %178 = vmatpush2.xpose.msra.mxu0 0.0
    %179 = vmatprep.subr.mxu0 0.0
    %180 = vmatpush2.xpose.msra.mxu0 0.0
    %181 = vmatprep.subr.mxu0 0.0
    %182 = vmatpush2.xpose.msra.mxu0 0.0
    %183 = vmatprep.subr.mxu0 0.0
    %184 = vmatpush2.xpose.msra.mxu0 0.0
    %185 = vmatprep.mubr.f32.mxu0 0.0
    %186 = vmatmul.mubr.f32.gmra.mxu0 %v62
    %v187 = vpop.f32.mrf.mxu0
    %v188 = vadd.f32 %v43, %v187
    %v189 = vpop.f32.mrf.mxu0
    %190 = vmatprep.mubr.f32.mxu0 0.0
    %191 = vmatmul.mubr.f32.gmra.mxu0 %v65
    %v192 = vpop.f32.mrf.mxu0
    %v193 = vadd.f32 %v48, %v192
    %v194 = vpop.f32.mrf.mxu0
    %195 = vmatprep.mubr.f32.mxu0 0.0
    %196 = vmatmul.mubr.f32.gmra.mxu0 %v68
    %v197 = vpop.f32.mrf.mxu0
    %v198 = vadd.f32 %v53, %v197
    %v199 = vpop.f32.mrf.mxu0
    %200 = vmatprep.mubr.f32.mxu0 0.0
    %201 = vmatmul.mubr.f32.gmra.mxu0 %v71
    %v202 = vpop.f32.mrf.mxu0
    %v203 = vadd.f32 %v58, %v202
    %v204 = vpop.f32.mrf.mxu0
    %205 = vdwg.mxu0
    %v206 = vmax.f32 %v188, 0.0
    %v207 = vmax.f32 %v193, 0.0
    %v208 = vmax.f32 %v198, 0.0
    %v209 = vmax.f32 %v203, 0.0
    %210 = vset.pattern.permute.xlu0 1
    %211 = vperm.xlu0 %210, %v35
    %v212 = vpop.permute.xlu0 %211
    %214 = vset.pattern.permute.xlu0 1
    %215 = vperm.xlu0 %214, %v36
    %v216 = vpop.permute.xlu0 %215
    %218 = vset.pattern.permute.xlu0 1
    %219 = vperm.xlu0 %218, %v37
    %v220 = vpop.permute.xlu0 %219
    %222 = vset.pattern.permute.xlu0 1
    %223 = vperm.xlu0 %222, %v38
    %v224 = vpop.permute.xlu0 %223
    %226 = vrot.lane.b32.xlu0 %v31, 112
    %v227 = vpop.permute.xlu0 %226
    %228 = vrot.lane.b32.xlu0 %v32, 112
    %v229 = vpop.permute.xlu0 %228
    %230 = vrot.lane.b32.xlu0 %v33, 112
    %v231 = vpop.permute.xlu0 %230
    %232 = vrot.lane.b32.xlu0 %v34, 112
    %v233 = vpop.permute.xlu0 %232
    %vm234 = vcmask 261120
    %v235 = vsel %vm234, %v227, 0
    %v237 = vsel %vm234, %v229, 0
    %v239 = vsel %vm234, %v231, 0
    %v241 = vsel %vm234, %v233, 0
    %243 = vmatprep.subr.mxu0 0.0
    %244 = vmatpush1.msra.mxu0 0.0
    %245 = vmatprep.subr.mxu0 0.0
    %246 = vmatpush1.msra.mxu0 0.0
    %247 = vmatprep.subr.mxu0 0.0
    %248 = vmatpush1.msra.mxu0 0.0
    %249 = vmatprep.subr.mxu0 0.0
    %250 = vmatpush1.msra.mxu0 0.0
    %251 = vmatprep.subr.mxu0 0.0
    %252 = vmatpush1.msra.mxu0 0.0
    %253 = vmatprep.subr.mxu0 0.0
    %254 = vmatpush1.msra.mxu0 0.0
    %255 = vmatprep.subr.mxu0 0.0
    %256 = vmatpush1.msra.mxu0 0.0
    %257 = vmatprep.subr.mxu0 0.0
    %258 = vmatpush1.msra.mxu0 0.0
    %259 = vmatprep.subr.mxu0 0.0
    %260 = vmatpush1.msra.mxu0 0.0
    %261 = vmatprep.subr.mxu0 0.0
    %262 = vmatpush1.msra.mxu0 0.0
    %263 = vmatprep.subr.mxu0 0.0
    %264 = vmatpush1.msra.mxu0 0.0
    %265 = vmatprep.subr.mxu0 0.0
    %266 = vmatpush1.msra.mxu0 0.0
    %267 = vmatprep.subr.mxu0 0.0
    %268 = vmatpush1.msra.mxu0 %v209
    %269 = vmatprep.subr.mxu0 0.0
    %270 = vmatpush1.msra.mxu0 %v208
    %271 = vmatprep.subr.mxu0 0.0
    %272 = vmatpush1.msra.mxu0 %v207
    %273 = vmatprep.subr.mxu0 0.0
    %274 = vmatpush1.msra.mxu0 %v206
    %275 = vmatprep.subr.mxu0 0.0
    %276 = vmatpush2.msra.mxu0 0.0
    %277 = vmatprep.subr.mxu0 0.0
    %278 = vmatpush2.msra.mxu0 0.0
    %279 = vmatprep.subr.mxu0 0.0
    %280 = vmatpush2.msra.mxu0 0.0
    %281 = vmatprep.subr.mxu0 0.0
    %282 = vmatpush2.msra.mxu0 0.0
    %283 = vmatprep.subr.mxu0 0.0
    %284 = vmatpush2.msra.mxu0 0.0
    %285 = vmatprep.subr.mxu0 0.0
    %286 = vmatpush2.msra.mxu0 0.0
    %287 = vmatprep.subr.mxu0 0.0
    %288 = vmatpush2.msra.mxu0 0.0
    %289 = vmatprep.subr.mxu0 0.0
    %290 = vmatpush2.msra.mxu0 0.0
    %291 = vmatprep.subr.mxu0 0.0
    %292 = vmatpush2.msra.mxu0 0.0
    %293 = vmatprep.subr.mxu0 0.0
    %294 = vmatpush2.msra.mxu0 0.0
    %295 = vmatprep.subr.mxu0 0.0
    %296 = vmatpush2.msra.mxu0 0.0
    %297 = vmatprep.subr.mxu0 0.0
    %298 = vmatpush2.msra.mxu0 0.0
    %299 = vmatprep.subr.mxu0 0.0
    %300 = vmatpush2.msra.mxu0 0.0
    %301 = vmatprep.subr.mxu0 0.0
    %302 = vmatpush2.msra.mxu0 0.0
    %303 = vmatprep.subr.mxu0 0.0
    %304 = vmatpush2.msra.mxu0 0.0
    %305 = vmatprep.subr.mxu0 0.0
    %306 = vmatpush2.msra.mxu0 0.0
    %307 = vmatprep.mubr.f32.mxu0 0.0
    %308 = vmatmul.mubr.f32.gmra.mxu0 %v235
    %v309 = vpop.f32.mrf.mxu0
    %v310 = vadd.f32 %v212, %v309
    %v311 = vpop.f32.mrf.mxu0
    %312 = vmatprep.mubr.f32.mxu0 0.0
    %313 = vmatmul.mubr.f32.gmra.mxu0 %v237
    %v314 = vpop.f32.mrf.mxu0
    %v315 = vadd.f32 %v216, %v314
    %v316 = vpop.f32.mrf.mxu0
    %317 = vmatprep.mubr.f32.mxu0 0.0
    %318 = vmatmul.mubr.f32.gmra.mxu0 %v239
    %v319 = vpop.f32.mrf.mxu0
    %v320 = vadd.f32 %v220, %v319
    %v321 = vpop.f32.mrf.mxu0
    %322 = vmatprep.mubr.f32.mxu0 0.0
    %323 = vmatmul.mubr.f32.gmra.mxu0 %v241
    %v324 = vpop.f32.mrf.mxu0
    %v325 = vadd.f32 %v224, %v324
    %v326 = vpop.f32.mrf.mxu0
    %327 = vdwg.mxu0
    %v328 = vmax.f32 %v310, 0.0
    %v329 = vmax.f32 %v315, 0.0
    %v330 = vmax.f32 %v320, 0.0
    %v331 = vmax.f32 %v325, 0.0
    %332 = vset.pattern.permute.xlu0 2
    %333 = vperm.xlu0 %332, %v35
    %v334 = vpop.permute.xlu0 %333
    %336 = vset.pattern.permute.xlu0 2
    %337 = vperm.xlu0 %336, %v36
    %v338 = vpop.permute.xlu0 %337
    %340 = vset.pattern.permute.xlu0 2
    %341 = vperm.xlu0 %340, %v37
    %v342 = vpop.permute.xlu0 %341
    %344 = vset.pattern.permute.xlu0 2
    %345 = vperm.xlu0 %344, %v38
    %v346 = vpop.permute.xlu0 %345
    %v348 = vmul.f32 %v328, %v334
    %v349 = vmul.f32 %v329, %v338
    %v350 = vmul.f32 %v330, %v342
    %v351 = vmul.f32 %v331, %v346
    %v352 = vadd.f32 %v348, %v349
    %v353 = vadd.f32 %v352, %v350
    %v354 = vadd.f32 %v353, %v351
    %v355 = vrot.slane %v354, 4
    %v356 = vadd.f32 %v354, %v355
    %v357 = vrot.slane %v356, 2
    %v358 = vadd.f32 %v356, %v357
    %v359 = vrot.slane %v358, 1
    %v360 = vadd.f32 %v358, %v359
    %362 = vset.pattern.permute.xlu0 3
    %363 = vperm.xlu0 %362, %v39
    %v364 = vpop.permute.xlu0 %363
    %v366 = vadd.f32 %v360, %v364
    %367 = vst [vmem:[#allocation2] sm:$0x1] %v366
    // Predicated region
    $region14: #{tpu_custom_call.1} parent=1 // pred_check
      _
    $region15: #{tpu_custom_call.1} parent=1 // pred_check_branch
      %369 = sbr.rel (0) target = $region17
    $region16: #{tpu_custom_call.1} parent=1 // pred_region
      %s371 = ssub.s32 16, 16
      %372 = vsyncadd [#allocation3], %s371
      %s374 = sshll.u32 [#allocation2], 4
      %s375 = int_to_ptr.vmem [resolvable:$true] %s374
      %377 = dma.vmem_to_hbm [thread:$0]  %s375, 16, %s3, [#allocation3]
    $region17: #{tpu_custom_call.1} parent=1 // pred_fallthru
      _
    // Predicated region
    $region18: #{tpu_custom_call.1} parent=1 // pred_check
      _
    $region19: #{tpu_custom_call.1} parent=1 // pred_check_branch
      %379 = sbr.rel (0) target = $region21
    $region20: #{tpu_custom_call.1} parent=1 // pred_region
      %380 = dma.done [#allocation3], 16
    $region21: #{tpu_custom_call.1} parent=1 // pred_fallthru
      _
    %381 = vsyncpa [#allocation3], 1

</llo_original>
